<compile_context>
chip_gen: v5e
topology: v5e:2x2
jax: 0.10.0
libtpu: 0.0.40
codegen_flags: <defaults>
</compile_context>

<pallas_src>
import functools
from dataclasses import dataclass
from typing import Optional

import jax
import jax.numpy as jnp
from jax import lax
from jax.experimental import pallas as pl
from jax.experimental.pallas import tpu as pltpu

_SUPPORTED_HEAD_SIZES = [64, 80, 96, 112, 128, 256]
_NEG_INF = -1e30


# ----------------------------------------------------------------------------
# InputMetadata (minimal JAX analogue of vLLM's InputMetadata)
# ----------------------------------------------------------------------------
@dataclass
class InputMetadata:
    num_prompt_tokens: int
    num_generation_tokens: int
    slot_mapping: Optional[jnp.ndarray] = None       # [num_tokens] int32
    block_tables: Optional[jnp.ndarray] = None        # [num_seqs, max_blocks] int32
    context_lens: Optional[jnp.ndarray] = None        # [num_seqs] int32
    max_context_len: int = 0
    to_cache: Optional[jnp.ndarray] = None


# ----------------------------------------------------------------------------
# Pallas kernel 1: prompt-phase causal attention (multi_query_kv_attention)
#   Flash-tiled: grid = (B, KV, num_q_tiles, num_k_tiles); online softmax carried
#   in VMEM scratch across the (innermost, "arbitrary") key-tile axis.  GQA is
#   handled in-kernel by processing the G query heads sharing one KV head.
# ----------------------------------------------------------------------------
def _prompt_flash_kernel(q_ref, k_ref, v_ref, o_ref, m_sc, l_sc, acc_sc,
                         *, scale, seq_len):
    # q_ref: (1, TQ, 1, G, D)   k_ref / v_ref: (1, TK, 1, 1, D)
    TQ = q_ref.shape[1]
    G = q_ref.shape[3]
    D = q_ref.shape[4]
    TK = k_ref.shape[1]

    qi = pl.program_id(2)
    ki = pl.program_id(3)
    nk = pl.num_programs(3)

    @pl.when(ki == 0)
    def _():
        m_sc[...] = jnp.full(m_sc.shape, _NEG_INF, m_sc.dtype)
        l_sc[...] = jnp.zeros(l_sc.shape, l_sc.dtype)
        acc_sc[...] = jnp.zeros(acc_sc.shape, acc_sc.dtype)

    q_start = qi * TQ
    k_start = ki * TK

    # Skip key tiles that lie entirely above the causal diagonal (compute skip;
    # the tile DMA still happens through the BlockSpec pipeline).
    @pl.when(k_start < q_start + TQ)
    def _():
        q = q_ref[...].reshape(TQ * G, D)              # row r = t*G + g
        k = k_ref[...].reshape(TK, D)
        v = v_ref[...].reshape(TK, D)
        # scale the (small) query tile in f32, run the matmuls in the input dtype
        qs = (q.astype(jnp.float32) * scale).astype(k.dtype)
        s = lax.dot_general(qs, k, (((1,), (1,)), ((), ())),
                            preferred_element_type=jnp.float32)      # (TQ*G, TK)
        # causal + sequence-padding mask; one iota column per query row, no
        # per-element integer divide over the full score matrix.
        q_pos = q_start + lax.broadcasted_iota(
            jnp.int32, (TQ, G, 1), 0).reshape(TQ * G, 1)
        k_pos = k_start + lax.broadcasted_iota(jnp.int32, (1, TK), 1)
        valid = (k_pos <= q_pos) & (k_pos < seq_len)
        s = jnp.where(valid, s, _NEG_INF)

        m_prev = m_sc[...]
        m_new = jnp.maximum(m_prev, jnp.max(s, axis=-1, keepdims=True))
        alpha = jnp.exp(m_prev - m_new)
        p = jnp.exp(s - m_new)
        p = jnp.where(valid, p, 0.0)                   # fully-masked rows stay 0
        l_sc[...] = alpha * l_sc[...] + jnp.sum(p, axis=-1, keepdims=True)
        acc_sc[...] = alpha * acc_sc[...] + lax.dot_general(
            p.astype(v.dtype), v, (((1,), (0,)), ((), ())),
            preferred_element_type=jnp.float32)
        m_sc[...] = m_new

    @pl.when(ki == nk - 1)
    def _():
        l = jnp.maximum(l_sc[...], 1e-30)              # padded rows guard
        out = acc_sc[...] / l                          # exact normalization
        o_ref[...] = out.reshape(1, TQ, 1, G, D).astype(o_ref.dtype)


def prompt_attention(q, k, v, scale, *, tile=256):
    # q: [B, S, KV, G, D]  k, v: [B, S, KV, 1, D]  (free views of token-major inputs)
    B, S, KV, G, D = q.shape
    t = min(tile, S)
    s_pad = ((S + t - 1) // t) * t
    if s_pad != S:
        pad = ((0, 0), (0, s_pad - S), (0, 0), (0, 0), (0, 0))
        q = jnp.pad(q, pad)
        k = jnp.pad(k, pad)
        v = jnp.pad(v, pad)
    n_tiles = s_pad // t

    grid_spec = pltpu.PrefetchScalarGridSpec(
        num_scalar_prefetch=0,
        grid=(B, KV, n_tiles, n_tiles),
        in_specs=[
            pl.BlockSpec((1, t, 1, G, D), lambda b, h, qi, ki: (b, qi, h, 0, 0)),
            pl.BlockSpec((1, t, 1, 1, D), lambda b, h, qi, ki: (b, ki, h, 0, 0)),
            pl.BlockSpec((1, t, 1, 1, D), lambda b, h, qi, ki: (b, ki, h, 0, 0)),
        ],
        out_specs=pl.BlockSpec((1, t, 1, G, D),
                               lambda b, h, qi, ki: (b, qi, h, 0, 0)),
        scratch_shapes=[
            pltpu.VMEM((t * G, 1), jnp.float32),   # running max
            pltpu.VMEM((t * G, 1), jnp.float32),   # running denom
            pltpu.VMEM((t * G, D), jnp.float32),   # output accumulator
        ],
    )
    out = pl.pallas_call(
        functools.partial(_prompt_flash_kernel, scale=scale, seq_len=S),
        out_shape=jax.ShapeDtypeStruct((B, s_pad, KV, G, D), q.dtype),
        grid_spec=grid_spec,
        compiler_params=pltpu.CompilerParams(
            dimension_semantics=("parallel", "parallel", "parallel", "arbitrary"),
            vmem_limit_bytes=48 * 1024 * 1024),
    )(q, k, v)
    if s_pad != S:
        out = out[:, :S]
    return out


# ----------------------------------------------------------------------------
# Pallas kernel 2: reshape_and_cache -- batched row scatter into the paged cache.
#   tokens_per_step tokens per grid step; all 2*tokens_per_step DMAs are started
#   first and then waited on as a batch (overlapped).  The cache buffers are
#   aliased (input_output_aliases) so the update is in place under donation.
# ----------------------------------------------------------------------------
def _cache_update_kernel(slot_ref, key_ref, val_ref, kc_in, vc_in,
                         kc_out, vc_out, sem, *, block_size, tokens_per_step):
    del kc_in, vc_in   # same HBM buffers as kc_out / vc_out (aliased)
    g = pl.program_id(0)

    def dma_pair(i, slot):
        blk = slot // block_size
        off = lax.rem(slot, block_size)
        kcp = pltpu.make_async_copy(
            key_ref.at[i], kc_out.at[blk, :, pl.ds(off, 1), :], sem.at[0, i])
        vcp = pltpu.make_async_copy(
            val_ref.at[i], vc_out.at[blk, :, pl.ds(off, 1), :], sem.at[1, i])
        return kcp, vcp

    # Issue every valid DMA in this token block ...
    for i in range(tokens_per_step):
        slot = slot_ref[g * tokens_per_step + i]

        @pl.when(slot >= 0)          # negative slots mark padding tokens
        def _(i=i, slot=slot):
            kcp, vcp = dma_pair(i, slot)
            kcp.start()
            vcp.start()

    # ... then wait for them as a batch (same guards as the starts).
    for i in range(tokens_per_step):
        slot = slot_ref[g * tokens_per_step + i]

        @pl.when(slot >= 0)
        def _(i=i, slot=slot):
            kcp, vcp = dma_pair(i, slot)
            kcp.wait()
            vcp.wait()


def reshape_and_cache(key, value, key_cache, value_cache, slot_mapping,
                      tokens_per_step=8):
    """key/value: [num_tokens, num_kv_heads, head_size]
       key_cache / value_cache: [num_blocks, num_kv_heads, block_size, head_size]"""
    num_tokens, KV, D = key.shape
    block_size = key_cache.shape[2]
    if num_tokens == 0:
        return key_cache, value_cache

    tps = max(1, min(tokens_per_step, num_tokens))
    padded = ((num_tokens + tps - 1) // tps) * tps
    slot_mapping = slot_mapping.astype(jnp.int32)
    if padded != num_tokens:
        extra = padded - num_tokens
        key = jnp.pad(key, ((0, extra), (0, 0), (0, 0)))
        value = jnp.pad(value, ((0, extra), (0, 0), (0, 0)))
        slot_mapping = jnp.concatenate(
            [slot_mapping, jnp.full((extra,), -1, jnp.int32)])

    key_r = key.reshape(padded, KV, 1, D)
    val_r = value.reshape(padded, KV, 1, D)

    kc, vc = pl.pallas_call(
        functools.partial(_cache_update_kernel, block_size=block_size,
                          tokens_per_step=tps),
        out_shape=(jax.ShapeDtypeStruct(key_cache.shape, key_cache.dtype),
                   jax.ShapeDtypeStruct(value_cache.shape, value_cache.dtype)),
        grid=(padded // tps,),
        in_specs=[
            pl.BlockSpec(memory_space=pltpu.MemorySpace.SMEM),     # slot_mapping
            pl.BlockSpec((tps, KV, 1, D), lambda g: (g, 0, 0, 0)),  # key rows
            pl.BlockSpec((tps, KV, 1, D), lambda g: (g, 0, 0, 0)),  # value rows
            pl.BlockSpec(memory_space=pl.ANY),                      # key_cache
            pl.BlockSpec(memory_space=pl.ANY),                      # value_cache
        ],
        out_specs=(pl.BlockSpec(memory_space=pl.ANY),
                   pl.BlockSpec(memory_space=pl.ANY)),
        scratch_shapes=[pltpu.SemaphoreType.DMA((2, tps))],
        input_output_aliases={3: 0, 4: 1},
        compiler_params=pltpu.CompilerParams(
            dimension_semantics=("arbitrary",), has_side_effects=True),
    )(slot_mapping, key_r, val_r, key_cache, value_cache)
    return kc, vc


# ----------------------------------------------------------------------------
# Pallas kernel 3: paged decode attention (single_query_cached_kv_attention)
#   grid = (num_seqs,).  Caches stay in HBM (pl.ANY); the kernel hand-rolls a
#   double-buffered DMA pipeline fetching `pages_per_fetch` pages per chunk;
#   out-of-range pages are skipped (matching start/wait guards), not re-fetched.
#   Flash-style online softmax; GQA handled in-kernel (no head replication).
# ----------------------------------------------------------------------------
def _paged_decode_kernel(bt_ref, cl_ref, q_ref, k_hbm, v_hbm, o_ref,
                         kbuf, vbuf, ksem, vsem, m_sc, l_sc, acc_sc,
                         *, scale, block_size, pages_per_fetch, num_kv_heads,
                         q_per_kv, kv_dtype):
    n = pl.program_id(0)
    NF = pages_per_fetch
    KV = num_kv_heads
    G = q_per_kv
    D = k_hbm.shape[-1]
    T = NF * block_size

    ctx = cl_ref[n]
    n_blocks = (ctx + block_size - 1) // block_size
    n_chunks = jnp.maximum((n_blocks + NF - 1) // NF, 1)

    # scale the tiny query in f32, run the matmuls in the stored KV dtype
    q = (q_ref[...].astype(jnp.float32) * scale).astype(kv_dtype).reshape(KV, G, D)

    def start_fetch(c, slot):
        for i in range(NF):
            blk = c * NF + i

            @pl.when(blk < n_blocks)           # only fetch real context pages
            def _(blk=blk, i=i, slot=slot):
                page = bt_ref[n, blk]
                pltpu.make_async_copy(
                    k_hbm.at[page], kbuf.at[slot, :, i], ksem.at[slot, i]).start()
                pltpu.make_async_copy(
                    v_hbm.at[page], vbuf.at[slot, :, i], vsem.at[slot, i]).start()

    def wait_fetch(c, slot):
        for i in range(NF):
            blk = c * NF + i

            @pl.when(blk < n_blocks)           # must mirror the start guards
            def _(i=i, slot=slot):
                pltpu.make_async_copy(
                    k_hbm.at[0], kbuf.at[slot, :, i], ksem.at[slot, i]).wait()
                pltpu.make_async_copy(
                    v_hbm.at[0], vbuf.at[slot, :, i], vsem.at[slot, i]).wait()

    m_sc[...] = jnp.full(m_sc.shape, _NEG_INF, m_sc.dtype)
    l_sc[...] = jnp.zeros(l_sc.shape, l_sc.dtype)
    acc_sc[...] = jnp.zeros(acc_sc.shape, acc_sc.dtype)

    start_fetch(0, 0)

    def chunk_body(c, carry):
        slot = lax.rem(c, 2)
        wait_fetch(c, slot)

        @pl.when(c + 1 < n_chunks)
        def _():
            start_fetch(c + 1, 1 - slot)

        k = kbuf[slot].reshape(KV, T, D)       # (KV, T, D) in cache dtype
        v = vbuf[slot].reshape(KV, T, D)
        s = jnp.einsum('kgd,ktd->kgt', q, k,
                       preferred_element_type=jnp.float32)          # (KV, G, T)
        pos = c * T + lax.broadcasted_iota(jnp.int32, (1, 1, T), 2)
        valid = pos < ctx
        s = jnp.where(valid, s, _NEG_INF)
        m_new = jnp.maximum(m_sc[...], jnp.max(s, axis=-1, keepdims=True))
        alpha = jnp.exp(m_sc[...] - m_new)
        p = jnp.exp(s - m_new)
        p = jnp.where(valid, p, 0.0)           # fully-masked chunks contribute 0
        l_sc[...] = alpha * l_sc[...] + jnp.sum(p, axis=-1, keepdims=True)
        acc_sc[...] = alpha * acc_sc[...] + jnp.einsum(
            'kgt,ktd->kgd', p.astype(v.dtype), v,
            preferred_element_type=jnp.float32)
        m_sc[...] = m_new
        return carry

    lax.fori_loop(0, n_chunks, chunk_body, 0)

    l = jnp.maximum(l_sc[...], 1e-30)          # guards ctx == 0 against 0/0
    out = acc_sc[...] / l                      # exact normalization  (KV, G, D)
    o_ref[...] = out.reshape(1, 1, KV * G * D).astype(o_ref.dtype)   # lane-dense


def paged_decode_attention(q, key_cache, value_cache, block_tables, context_lens,
                           scale, num_kv_heads, pages_per_fetch=8):
    """q: [num_seqs, num_heads, head_size]
       key_cache / value_cache: [num_blocks, num_kv_heads, block_size, head_size]"""
    num_seqs, H, D = q.shape
    _, KV, block_size, D2 = key_cache.shape
    assert KV == num_kv_heads and D2 == D and H % KV == 0
    G = H // KV
    max_blocks = block_tables.shape[1]
    NF = max(1, min(pages_per_fetch, max_blocks))

    q_lane = q.reshape(num_seqs, 1, H * D)     # lane-dense query input

    kernel = functools.partial(
        _paged_decode_kernel, scale=scale, block_size=block_size,
        pages_per_fetch=NF, num_kv_heads=KV, q_per_kv=G,
        kv_dtype=key_cache.dtype)

    grid_spec = pltpu.PrefetchScalarGridSpec(
        num_scalar_prefetch=2,
        grid=(num_seqs,),
        in_specs=[
            pl.BlockSpec((1, 1, H * D), lambda n, bt, cl: (n, 0, 0)),
            pl.BlockSpec(memory_space=pl.ANY),   # key_cache stays in HBM
            pl.BlockSpec(memory_space=pl.ANY),   # value_cache stays in HBM
        ],
        out_specs=pl.BlockSpec((1, 1, H * D), lambda n, bt, cl: (n, 0, 0)),
        scratch_shapes=[
            pltpu.VMEM((2, KV, NF, block_size, D), key_cache.dtype),    # K dbl buf
            pltpu.VMEM((2, KV, NF, block_size, D), value_cache.dtype),  # V dbl buf
            pltpu.SemaphoreType.DMA((2, NF)),
            pltpu.SemaphoreType.DMA((2, NF)),
            pltpu.VMEM((KV, G, 1), jnp.float32),    # m
            pltpu.VMEM((KV, G, 1), jnp.float32),    # l
            pltpu.VMEM((KV, G, D), jnp.float32),    # acc
        ],
    )
    out = pl.pallas_call(
        kernel,
        out_shape=jax.ShapeDtypeStruct((num_seqs, 1, H * D), q.dtype),
        grid_spec=grid_spec,
        compiler_params=pltpu.CompilerParams(
            dimension_semantics=("parallel",),
            vmem_limit_bytes=32 * 1024 * 1024),
    )(block_tables.astype(jnp.int32), context_lens.astype(jnp.int32),
      q_lane, key_cache, value_cache)
    return out.reshape(num_seqs, H, D)


# ----------------------------------------------------------------------------
# PagedAttention module (JAX)
# ----------------------------------------------------------------------------
class PagedAttention:
    def __init__(self, num_heads, head_size, scale, num_kv_heads=None,
                 sliding_window=None):
        self.num_heads = num_heads
        self.head_size = head_size
        self.scale = float(scale)
        self.num_kv_heads = num_heads if num_kv_heads is None else num_kv_heads
        self.sliding_window = sliding_window  # TODO(synk): sliding-window local mask
        assert self.num_heads % self.num_kv_heads == 0
        self.num_queries_per_kv = self.num_heads // self.num_kv_heads
        self.head_mapping = jnp.repeat(
            jnp.arange(self.num_kv_heads, dtype=jnp.int32), self.num_queries_per_kv)
        if self.head_size not in _SUPPORTED_HEAD_SIZES:
            raise ValueError(f"head_size ({self.head_size}) is not supported. "
                             f"Supported head sizes: {_SUPPORTED_HEAD_SIZES}.")

    def __call__(self, query, key, value, key_cache, value_cache,
                 input_metadata: InputMetadata):
        # query: [B, S, H*D]   key/value: [B, S, KV*D]
        # key_cache / value_cache: [num_blocks, KV, block_size, D] (TPU-native)
        B, S, _ = query.shape
        H, KV, D = self.num_heads, self.num_kv_heads, self.head_size
        G = self.num_queries_per_kv
        output = None

        # 1. prompt attention (no cache read)
        if input_metadata.num_prompt_tokens > 0:
            assert input_metadata.num_generation_tokens == 0
            q5 = query.reshape(B, S, KV, G, D)     # free views, no HBM transposes
            k5 = key.reshape(B, S, KV, 1, D)
            v5 = value.reshape(B, S, KV, 1, D)
            o = prompt_attention(q5, k5, v5, self.scale)
            output = o.reshape(B, S, H * D)

        # 2./3. write new K/V rows into the paged cache (aliased in-place scatter)
        if key_cache is not None and value_cache is not None:
            k_flat = key.reshape(-1, KV, D)
            v_flat = value.reshape(-1, KV, D)
            slot_mapping = input_metadata.slot_mapping.reshape(-1)
            if input_metadata.to_cache is not None:
                k_flat = k_flat[input_metadata.to_cache]
                v_flat = v_flat[input_metadata.to_cache]
                slot_mapping = slot_mapping[input_metadata.to_cache]
            key_cache, value_cache = reshape_and_cache(
                k_flat, v_flat, key_cache, value_cache, slot_mapping)

        # 4. paged decode attention (reads KV cache via block tables)
        if input_metadata.num_generation_tokens > 0:
            assert input_metadata.num_prompt_tokens == 0
            assert key_cache is not None and value_cache is not None
            q_dec = query.reshape(-1, H, D)
            o = paged_decode_attention(
                q_dec, key_cache, value_cache,
                input_metadata.block_tables, input_metadata.context_lens,
                self.scale, KV)
            output = o.reshape(B, S, H * D)

        if output is None:
            output = jnp.zeros((B, S, H * D), query.dtype)
        return output, key_cache, value_cache


# ----------------------------------------------------------------------------
# pure-JAX references for correctness checking
# ----------------------------------------------------------------------------
def _ref_prompt(q, k, v, scale):
    # q/k/v: [B, S, H, D] (K/V already expanded to H heads)
    s = jnp.einsum('bqhd,bkhd->bhqk', q, k) * scale
    S = q.shape[1]
    mask = jnp.tril(jnp.ones((S, S), bool))
    s = jnp.where(mask, s, -jnp.inf)
    p = jax.nn.softmax(s, axis=-1)
    return jnp.einsum('bhqk,bkhd->bqhd', p, v)


def _ref_decode(q, k_ctx, v_ctx, scale):
    # q: [H, D]   k_ctx/v_ctx: [ctx, H, D]
    s = jnp.einsum('hd,thd->ht', q, k_ctx) * scale
    p = jax.nn.softmax(s, axis=-1)
    return jnp.einsum('ht,thd->hd', p, v_ctx)


def _run_case(num_heads, num_kv_heads, head_size, batch, seq, block_size,
              num_blocks, case_idx):
    scale = 1.0 / head_size ** 0.5
    attn = PagedAttention(num_heads, head_size, scale, num_kv_heads=num_kv_heads)
    G = num_heads // num_kv_heads
    hidden_q = num_heads * head_size
    hidden_kv = num_kv_heads * head_size

    base_key = jax.random.fold_in(jax.random.PRNGKey(0), case_idx)
    keys = jax.random.split(base_key, 6)
    q_p = jax.random.normal(keys[0], (batch, seq, hidden_q), jnp.float32)
    k_p = jax.random.normal(keys[1], (batch, seq, hidden_kv), jnp.float32)
    v_p = jax.random.normal(keys[2], (batch, seq, hidden_kv), jnp.float32)

    key_cache = jnp.zeros((num_blocks, num_kv_heads, block_size, head_size),
                          jnp.float32)
    value_cache = jnp.zeros_like(key_cache)

    # attention tolerances leave headroom for TPU default-precision f32 matmuls
    tol = dict(atol=2e-2, rtol=2e-2)

    # ------------------- prompt phase (seq b fills cache block b) -------------------
    slot_mapping_p = jnp.arange(batch * seq, dtype=jnp.int32)
    meta_p = InputMetadata(num_prompt_tokens=batch * seq, num_generation_tokens=0,
                           slot_mapping=slot_mapping_p)
    out_p, key_cache, value_cache = attn(q_p, k_p, v_p, key_cache, value_cache,
                                         meta_p)
    out_p = jax.block_until_ready(out_p)

    q4 = q_p.reshape(batch, seq, num_heads, head_size)
    k4 = k_p.reshape(batch, seq, num_kv_heads, head_size)
    v4 = v_p.reshape(batch, seq, num_kv_heads, head_size)
    ref_p = _ref_prompt(q4, jnp.repeat(k4, G, axis=2), jnp.repeat(v4, G, axis=2),
                        scale)
    assert jnp.allclose(out_p.reshape(batch, seq, num_heads, head_size), ref_p,
                        **tol), "prompt attention mismatch"

    # cache scatter check (seq length == block_size so block b is fully filled)
    for b in range(batch):
        assert jnp.allclose(key_cache[b], k4[b].transpose(1, 0, 2),
                            atol=1e-6, rtol=1e-6), "key cache mismatch"
        assert jnp.allclose(value_cache[b], v4[b].transpose(1, 0, 2),
                            atol=1e-6, rtol=1e-6), "value cache mismatch"

    # ------------------- decode phase -------------------
    q_g = jax.random.normal(keys[3], (batch, 1, hidden_q), jnp.float32)
    k_g = jax.random.normal(keys[4], (batch, 1, hidden_kv), jnp.float32)
    v_g = jax.random.normal(keys[5], (batch, 1, hidden_kv), jnp.float32)

    # seq 0: 16 prompt tokens + new token in fresh block 2   (ctx = 17)
    # seq 1: 8 prompt tokens  + new token at block 1 offset 8 (ctx = 9, ragged)
    ctx0 = seq + 1
    ctx1 = seq // 2 + 1
    slot_mapping_g = jnp.array([2 * block_size, 1 * block_size + seq // 2],
                               jnp.int32)
    block_tables = jnp.array([[0, 2], [1, 1]], dtype=jnp.int32)
    context_lens = jnp.array([ctx0, ctx1], dtype=jnp.int32)
    meta_g = InputMetadata(num_prompt_tokens=0, num_generation_tokens=batch,
                           slot_mapping=slot_mapping_g, block_tables=block_tables,
                           context_lens=context_lens, max_context_len=ctx0)
    out_g, key_cache, value_cache = attn(q_g, k_g, v_g, key_cache, value_cache,
                                         meta_g)
    out_g = jax.block_until_ready(out_g)

    q_g3 = q_g.reshape(batch, num_heads, head_size)
    k_g4 = k_g.reshape(batch, 1, num_kv_heads, head_size)
    v_g4 = v_g.reshape(batch, 1, num_kv_heads, head_size)
    out_g3 = out_g.reshape(batch, num_heads, head_size)
    for b, ctx in enumerate([ctx0, ctx1]):
        k_ctx = jnp.concatenate([k4[b, :ctx - 1], k_g4[b]], axis=0)
        v_ctx = jnp.concatenate([v4[b, :ctx - 1], v_g4[b]], axis=0)
        ref = _ref_decode(q_g3[b], jnp.repeat(k_ctx, G, axis=1),
                          jnp.repeat(v_ctx, G, axis=1), scale)
        assert jnp.allclose(out_g3[b], ref, **tol), "decode mismatch"


if __name__ == "__main__":
    # MHA config
    _run_case(num_heads=4, num_kv_heads=4, head_size=64, batch=2, seq=16,
              block_size=16, num_blocks=8, case_idx=0)
    # GQA config (4 query heads sharing 2 KV heads)
    _run_case(num_heads=4, num_kv_heads=2, head_size=64, batch=2, seq=16,
              block_size=16, num_blocks=8, case_idx=1)
    print("KERNEL_OK")
</pallas_src>

<mosaic_0001>
module attributes {stable_mosaic.version = 11 : i64} {
  func.func @_prompt_flash_kernel(%arg0: i32, %arg1: i32, %arg2: i32, %arg3: i32, %arg4: memref<1x16x1x1x64xf32, #tpu.memory_space<vmem>>, %arg5: memref<1x16x1x1x64xf32, #tpu.memory_space<vmem>>, %arg6: memref<1x16x1x1x64xf32, #tpu.memory_space<vmem>>, %arg7: memref<1x16x1x1x64xf32, #tpu.memory_space<vmem>>, %arg8: memref<16x1xf32, #tpu.memory_space<vmem>>, %arg9: memref<16x1xf32, #tpu.memory_space<vmem>>, %arg10: memref<16x64xf32, #tpu.memory_space<vmem>>) attributes {dimension_semantics = [#tpu.dimension_semantics<parallel>, #tpu.dimension_semantics<parallel>, #tpu.dimension_semantics<parallel>, #tpu.dimension_semantics<arbitrary>], iteration_bounds = array<i64: 2, 4, 1, 1>, scalar_prefetch = 0 : i64, scratch_operands = 3 : i64, tpu.core_type = #tpu.core_type<tc>, window_params = [{transform_indices = @transform_0, window_bounds = array<i64: 1, 16, 1, 1, 64>}, {transform_indices = @transform_1, window_bounds = array<i64: 1, 16, 1, 1, 64>}, {transform_indices = @transform_2, window_bounds = array<i64: 1, 16, 1, 1, 64>}, {transform_indices = @transform_3, window_bounds = array<i64: 1, 16, 1, 1, 64>}]} {
    %c0_i32 = arith.constant 0 : i32
    %0 = arith.cmpi eq, %arg3, %c0_i32 : i32
    %1 = arith.extui %0 : i1 to i32
    %c0_i32_0 = arith.constant 0 : i32
    %2 = arith.cmpi ne, %1, %c0_i32_0 : i32
    scf.if %2 {
      %cst = arith.constant -1.000000e+30 : f32
      %12 = vector.broadcast %cst : f32 to vector<16x1xf32>
      %c0 = arith.constant 0 : index
      %c0_6 = arith.constant 0 : index
      %13 = vector.load %arg8[%c0, %c0_6] : memref<16x1xf32, #tpu.memory_space<vmem>>, vector<16x1xf32>
      tpu.vector_store %arg8[%c0, %c0_6], %12 {strides = array<i32>} : memref<16x1xf32, #tpu.memory_space<vmem>>, vector<16x1xf32>,
      %cst_7 = arith.constant 0.000000e+00 : f32
      %14 = vector.broadcast %cst_7 : f32 to vector<16x1xf32>
      %c0_8 = arith.constant 0 : index
      %c0_9 = arith.constant 0 : index
      %15 = vector.load %arg9[%c0_8, %c0_9] : memref<16x1xf32, #tpu.memory_space<vmem>>, vector<16x1xf32>
      tpu.vector_store %arg9[%c0_8, %c0_9], %14 {strides = array<i32>} : memref<16x1xf32, #tpu.memory_space<vmem>>, vector<16x1xf32>,
      %cst_10 = arith.constant 0.000000e+00 : f32
      %16 = vector.broadcast %cst_10 : f32 to vector<16x64xf32>
      %c0_11 = arith.constant 0 : index
      %c0_12 = arith.constant 0 : index
      %17 = vector.load %arg10[%c0_11, %c0_12] : memref<16x64xf32, #tpu.memory_space<vmem>>, vector<16x64xf32>
      tpu.vector_store %arg10[%c0_11, %c0_12], %16 {strides = array<i32>} : memref<16x64xf32, #tpu.memory_space<vmem>>, vector<16x64xf32>,
    } else {
    }
    %c16_i32 = arith.constant 16 : i32
    %3 = arith.muli %arg2, %c16_i32 : i32
    %c16_i32_1 = arith.constant 16 : i32
    %4 = arith.muli %arg3, %c16_i32_1 : i32
    %c16_i32_2 = arith.constant 16 : i32
    %5 = arith.addi %3, %c16_i32_2 : i32
    %6 = arith.cmpi slt, %4, %5 : i32
    %7 = arith.extui %6 : i1 to i32
    %c0_i32_3 = arith.constant 0 : i32
    %8 = arith.cmpi ne, %7, %c0_i32_3 : i32
    scf.if %8 {
      %c0 = arith.constant 0 : index
      %c0_6 = arith.constant 0 : index
      %c0_7 = arith.constant 0 : index
      %c0_8 = arith.constant 0 : index
      %c0_9 = arith.constant 0 : index
      %12 = vector.load %arg4[%c0, %c0_6, %c0_7, %c0_8, %c0_9] : memref<1x16x1x1x64xf32, #tpu.memory_space<vmem>>, vector<1x16x1x1x64xf32>
      %13 = vector.shape_cast %12 : vector<1x16x1x1x64xf32> to vector<16x64xf32>
      %c0_10 = arith.constant 0 : index
      %c0_11 = arith.constant 0 : index
      %c0_12 = arith.constant 0 : index
      %c0_13 = arith.constant 0 : index
      %c0_14 = arith.constant 0 : index
      %14 = vector.load %arg5[%c0_10, %c0_11, %c0_12, %c0_13, %c0_14] : memref<1x16x1x1x64xf32, #tpu.memory_space<vmem>>, vector<1x16x1x1x64xf32>
      %15 = vector.shape_cast %14 : vector<1x16x1x1x64xf32> to vector<16x64xf32>
      %c0_15 = arith.constant 0 : index
      %c0_16 = arith.constant 0 : index
      %c0_17 = arith.constant 0 : index
      %c0_18 = arith.constant 0 : index
      %c0_19 = arith.constant 0 : index
      %16 = vector.load %arg6[%c0_15, %c0_16, %c0_17, %c0_18, %c0_19] : memref<1x16x1x1x64xf32, #tpu.memory_space<vmem>>, vector<1x16x1x1x64xf32>
      %17 = vector.shape_cast %16 : vector<1x16x1x1x64xf32> to vector<16x64xf32>
      %cst = arith.constant 1.250000e-01 : f32
      %18 = vector.broadcast %cst : f32 to vector<16x64xf32>
      %19 = arith.mulf %13, %18 : vector<16x64xf32>
      %cst_20 = arith.constant dense<0.000000e+00> : vector<16x16xf32>
      %20 = tpu.matmul %19, %15, %cst_20 {dimension_numbers = #tpu.dot_dimension_numbers<[1], [1], [0], [0], [0, 0, 1, 0], [], []>} : vector<16x64xf32>, vector<16x64xf32>, vector<16x16xf32> -> vector<16x16xf32>
      %21 = tpu.iota {dimensions = array<i32: 0>} : vector<16x1x1xi32>
      %22 = vector.shape_cast %21 : vector<16x1x1xi32> to vector<16x1xi32>
      %23 = vector.broadcast %3 : i32 to vector<16x1xi32>
      %24 = arith.addi %23, %22 : vector<16x1xi32>
      %25 = tpu.iota {dimensions = array<i32: 1>} : vector<1x16xi32>
      %26 = vector.broadcast %4 : i32 to vector<1x16xi32>
      %27 = arith.addi %26, %25 : vector<1x16xi32>
      %28 = vector.broadcast %27 : vector<1x16xi32> to vector<16x16xi32>
      %29 = vector.broadcast %24 : vector<16x1xi32> to vector<16x16xi32>
      %30 = arith.cmpi sle, %28, %29 : vector<16x16xi32>
      %c16_i32_21 = arith.constant 16 : i32
      %31 = vector.broadcast %c16_i32_21 : i32 to vector<1x16xi32>
      %32 = arith.cmpi slt, %27, %31 : vector<1x16xi32>
      %33 = vector.broadcast %32 : vector<1x16xi1> to vector<16x16xi1>
      %34 = arith.andi %30, %33 : vector<16x16xi1>
      %cst_22 = arith.constant -1.000000e+30 : f32
      %35 = vector.broadcast %cst_22 : f32 to vector<16x16xf32>
      %36 = arith.select %34, %20, %35 : vector<16x16xi1>, vector<16x16xf32>
      %c0_23 = arith.constant 0 : index
      %c0_24 = arith.constant 0 : index
      %37 = vector.load %arg8[%c0_23, %c0_24] : memref<16x1xf32, #tpu.memory_space<vmem>>, vector<16x1xf32>
      %cst_25 = arith.constant dense<0xFF800000> : vector<16xf32>
      %38 = vector.multi_reduction <maximumf>, %36, %cst_25 [1] : vector<16x16xf32> to vector<16xf32>
      %39 = vector.shape_cast %38 : vector<16xf32> to vector<16x1xf32>
      %40 = arith.maximumf %37, %39 : vector<16x1xf32>
      %41 = arith.subf %37, %40 : vector<16x1xf32>
      %42 = math.exp %41 : vector<16x1xf32>
      %43 = vector.broadcast %40 : vector<16x1xf32> to vector<16x16xf32>
      %44 = arith.subf %36, %43 : vector<16x16xf32>
      %45 = math.exp %44 : vector<16x16xf32>
      %cst_26 = arith.constant 0.000000e+00 : f32
      %46 = vector.broadcast %cst_26 : f32 to vector<16x16xf32>
      %47 = arith.select %34, %45, %46 : vector<16x16xi1>, vector<16x16xf32>
      %c0_27 = arith.constant 0 : index
      %c0_28 = arith.constant 0 : index
      %48 = vector.load %arg9[%c0_27, %c0_28] : memref<16x1xf32, #tpu.memory_space<vmem>>, vector<16x1xf32>
      %49 = arith.mulf %42, %48 : vector<16x1xf32>
      %cst_29 = arith.constant dense<0.000000e+00> : vector<16xf32>
      %50 = vector.multi_reduction <add>, %47, %cst_29 [1] : vector<16x16xf32> to vector<16xf32>
      %51 = vector.shape_cast %50 : vector<16xf32> to vector<16x1xf32>
      %52 = arith.addf %49, %51 : vector<16x1xf32>
      %c0_30 = arith.constant 0 : index
      %c0_31 = arith.constant 0 : index
      %53 = vector.load %arg9[%c0_30, %c0_31] : memref<16x1xf32, #tpu.memory_space<vmem>>, vector<16x1xf32>
      tpu.vector_store %arg9[%c0_30, %c0_31], %52 {strides = array<i32>} : memref<16x1xf32, #tpu.memory_space<vmem>>, vector<16x1xf32>,
      %c0_32 = arith.constant 0 : index
      %c0_33 = arith.constant 0 : index
      %54 = vector.load %arg10[%c0_32, %c0_33] : memref<16x64xf32, #tpu.memory_space<vmem>>, vector<16x64xf32>
      %55 = vector.broadcast %42 : vector<16x1xf32> to vector<16x64xf32>
      %56 = arith.mulf %55, %54 : vector<16x64xf32>
      %cst_34 = arith.constant dense<0.000000e+00> : vector<16x64xf32>
      %57 = tpu.matmul %47, %17, %cst_34 {dimension_numbers = #tpu.dot_dimension_numbers<[1], [0], [0], [1], [0, 0, 1, 1], [], []>} : vector<16x16xf32>, vector<16x64xf32>, vector<16x64xf32> -> vector<16x64xf32>
      %58 = arith.addf %56, %57 : vector<16x64xf32>
      %c0_35 = arith.constant 0 : index
      %c0_36 = arith.constant 0 : index
      %59 = vector.load %arg10[%c0_35, %c0_36] : memref<16x64xf32, #tpu.memory_space<vmem>>, vector<16x64xf32>
      tpu.vector_store %arg10[%c0_35, %c0_36], %58 {strides = array<i32>} : memref<16x64xf32, #tpu.memory_space<vmem>>, vector<16x64xf32>,
      %c0_37 = arith.constant 0 : index
      %c0_38 = arith.constant 0 : index
      %60 = vector.load %arg8[%c0_37, %c0_38] : memref<16x1xf32, #tpu.memory_space<vmem>>, vector<16x1xf32>
      tpu.vector_store %arg8[%c0_37, %c0_38], %40 {strides = array<i32>} : memref<16x1xf32, #tpu.memory_space<vmem>>, vector<16x1xf32>,
    } else {
    }
    %c0_i32_4 = arith.constant 0 : i32
    %9 = arith.cmpi eq, %arg3, %c0_i32_4 : i32
    %10 = arith.extui %9 : i1 to i32
    %c0_i32_5 = arith.constant 0 : i32
    %11 = arith.cmpi ne, %10, %c0_i32_5 : i32
    scf.if %11 {
      %c0 = arith.constant 0 : index
      %c0_6 = arith.constant 0 : index
      %12 = vector.load %arg9[%c0, %c0_6] : memref<16x1xf32, #tpu.memory_space<vmem>>, vector<16x1xf32>
      %cst = arith.constant 1.000000e-30 : f32
      %13 = vector.broadcast %cst : f32 to vector<16x1xf32>
      %14 = arith.maximumf %12, %13 : vector<16x1xf32>
      %c0_7 = arith.constant 0 : index
      %c0_8 = arith.constant 0 : index
      %15 = vector.load %arg10[%c0_7, %c0_8] : memref<16x64xf32, #tpu.memory_space<vmem>>, vector<16x64xf32>
      %16 = vector.broadcast %14 : vector<16x1xf32> to vector<16x64xf32>
      %17 = arith.divf %15, %16 : vector<16x64xf32>
      %18 = vector.shape_cast %17 : vector<16x64xf32> to vector<1x16x1x1x64xf32>
      %c0_9 = arith.constant 0 : index
      %c0_10 = arith.constant 0 : index
      %c0_11 = arith.constant 0 : index
      %c0_12 = arith.constant 0 : index
      %c0_13 = arith.constant 0 : index
      %19 = vector.load %arg7[%c0_9, %c0_10, %c0_11, %c0_12, %c0_13] : memref<1x16x1x1x64xf32, #tpu.memory_space<vmem>>, vector<1x16x1x1x64xf32>
      tpu.vector_store %arg7[%c0_9, %c0_10, %c0_11, %c0_12, %c0_13], %18 {strides = array<i32>} : memref<1x16x1x1x64xf32, #tpu.memory_space<vmem>>, vector<1x16x1x1x64xf32>,
    } else {
    }
    return
  }
  func.func @transform_0(%arg0: i32, %arg1: i32, %arg2: i32, %arg3: i32) -> (i32, i32, i32, i32, i32) {
    %c0_i32 = arith.constant 0 : i32
    %c0_i32_0 = arith.constant 0 : i32
    %c0_i32_1 = arith.constant 0 : i32
    return %arg0, %arg2, %arg1, %c0_i32, %c0_i32_0 : i32, i32, i32, i32, i32
  }
  func.func @transform_1(%arg0: i32, %arg1: i32, %arg2: i32, %arg3: i32) -> (i32, i32, i32, i32, i32) {
    %c0_i32 = arith.constant 0 : i32
    %c0_i32_0 = arith.constant 0 : i32
    %c0_i32_1 = arith.constant 0 : i32
    return %arg0, %arg3, %arg1, %c0_i32, %c0_i32_0 : i32, i32, i32, i32, i32
  }
  func.func @transform_2(%arg0: i32, %arg1: i32, %arg2: i32, %arg3: i32) -> (i32, i32, i32, i32, i32) {
    %c0_i32 = arith.constant 0 : i32
    %c0_i32_0 = arith.constant 0 : i32
    %c0_i32_1 = arith.constant 0 : i32
    return %arg0, %arg3, %arg1, %c0_i32, %c0_i32_0 : i32, i32, i32, i32, i32
  }
  func.func @transform_3(%arg0: i32, %arg1: i32, %arg2: i32, %arg3: i32) -> (i32, i32, i32, i32, i32) {
    %c0_i32 = arith.constant 0 : i32
    %c0_i32_0 = arith.constant 0 : i32
    %c0_i32_1 = arith.constant 0 : i32
    return %arg0, %arg2, %arg1, %c0_i32, %c0_i32_0 : i32, i32, i32, i32, i32
  }
}

</mosaic_0001>

<llo_original>
// kernel: tpu_custom_call.1
$region0: #{tpu_custom_call.1}
  #allocation0 [shape = 'u32[]', space=smem, size = 0x4, offset = 0x4, fixed_abs, tag = 'smem constant byte address 0x4 - core index']
  #allocation1 [shape = 'u32[72,128]{1,0:T(1,128)}', space=vmem, size = 0x9000, scoped, tag = 'internal scratch']
  #allocation2 [shape = 'f32[16,1]{1,0:T(8,128)}', space=vmem, size = 0x2000, scoped, tag = 'scratch operand']
  #allocation3 [shape = 'f32[16,1]{1,0:T(8,128)}', space=vmem, size = 0x2000, scoped, tag = 'scratch operand']
  #allocation4 [shape = 'f32[16,64]{1,0:T(8,128)}', space=vmem, size = 0x2000, scoped, tag = 'scratch operand']
  %s0 = inlined_call_operand.hbm [shape: f32[2,16,4,1,64], index: 0, kind: input, shape index: {}]
  %s1 = inlined_call_operand.hbm [shape: f32[2,16,4,1,64], index: 1, kind: input, shape index: {}]
  %s2 = inlined_call_operand.hbm [shape: f32[2,16,4,1,64], index: 2, kind: input, shape index: {}]
  %s3 = inlined_call_operand.hbm [shape: f32[2,16,4,1,64], index: 3, kind: output, shape index: {}]
  %s4 = sld [smem:[#allocation0]]
  $region69: #{tpu_custom_call.1} parent=0
    _
  %s6 = ssub.s32 1, %s4
  %s7 = scalar_select 0, %s6, %s4
  $region1: #{tpu_custom_call.1} parent=0
    #allocation5 [shape = 'u8[16384]{0}', space=vmem, size = 0x4000, scoped, tag = 'input window, operand 0']
    #allocation6 [shape = 's32[2]{0}', space=sflag, size = 0x8, scoped, tag = 'scoped memory for tpu_custom_call.1']
    #allocation7 [shape = 's32[2]{0}', space=sflag, size = 0x8, scoped, tag = 'scoped memory for tpu_custom_call.1']
    #allocation8 [shape = 'u8[16384]{0}', space=vmem, size = 0x4000, scoped, tag = 'input window, operand 1']
    #allocation9 [shape = 's32[2]{0}', space=sflag, size = 0x8, scoped, tag = 'scoped memory for tpu_custom_call.1']
    #allocation10 [shape = 'u8[16384]{0}', space=vmem, size = 0x4000, scoped, tag = 'input window, operand 2']
    #allocation11 [shape = 'u8[16384]{0}', space=vmem, size = 0x4000, scoped, tag = 'output window, operand 0']
    %8 = vsyncpa [#allocation6], 0
    %s9 = scalar_lea.sflag [#allocation6], 1
    %10 = vsyncpa %s9, 0
    %11 = vsyncpa [#allocation9], 0
    %s12 = scalar_lea.sflag [#allocation9], 1
    %13 = vsyncpa %s12, 0
    %14 = vsyncpa [#allocation7], 0
    %s15 = scalar_lea.sflag [#allocation7], 1
    %16 = vsyncpa %s15, 0
    loop: start=0, step=1, limit=10
    $region2: #{tpu_custom_call.1} parent=1 // loop_pre_header
      _
    $region3: #{tpu_custom_call.1} parent=1 // loop_header
      %s18 = sphi 0, %s22
      %p19 = scmp.ge.s32.totalorder %s18, 10
      %s25 = sphi 0, %s51
      %s26 = sphi 0, %s47
      %s27 = sphi 0, %s43
      %s28 = sphi 0, %s39
      %s29 = sphi 0, %s25
      %s30 = sphi 0, %s26
      %s31 = sphi 0, %s27
      %s32 = sphi 0, %s28
      %s33 = sphi 0, %s29
      %s34 = sphi 0, %s30
      %s35 = sphi 0, %s31
      %s36 = sphi 0, %s32
      %s58 = sphi 0, %s60
      %s61 = sphi 0, %s58
      %s62 = sphi 0, %s61
      %s78 = sphi 0, %s62
      %s88 = sphi 0, %s90
      %s91 = sphi 0, %s88
      %s92 = sphi 0, %s91
      %s108 = sphi 0, %s92
      %s118 = sphi 0, %s120
      %s121 = sphi 0, %s118
      %s122 = sphi 0, %s121
      %s138 = sphi 0, %s122
      %s148 = sphi 0, %s150
      %s151 = sphi 0, %s148
      %s152 = sphi 0, %s151
      %s168 = sphi 0, %s152
    $region4: #{tpu_custom_call.1} parent=1 // loop_header_branch
      %21 = sbr.rel (%p19) target = $region8
    $region5: #{tpu_custom_call.1} parent=1 // loop_body
      %s23 = ssub.s32 %s18, 1
      %s24 = ssub.s32 %s18, 2
      %s37 = sadd.s32 1, %s28
      %p38 = scmp.ge.s32.totalorder %s37, 1
      %s39 = scalar_select %p38, 0, %s37
      %s40 = sadd.s32 1, %s27
      %s41 = scalar_select %p38, %s40, %s27
      %p42 = scmp.ge.s32.totalorder %s41, 1
      %s43 = scalar_select %p42, 0, %s41
      %s44 = sadd.s32 1, %s26
      %s45 = scalar_select %p42, %s44, %s26
      %p46 = scmp.ge.s32.totalorder %s45, 4
      %s47 = scalar_select %p46, 0, %s45
      %s48 = sadd.s32 1, %s25
      %s49 = scalar_select %p46, %s48, %s25
      %p50 = scmp.ge.s32.totalorder %s49, 2
      %s51 = scalar_select %p50, 0, %s49
      %s52 = ssub.s32 %s25, %s51
      %s53 = ssub.s32 %s27, %s43
      %s54 = sor.u32 %s52, %s53
      %s55 = ssub.s32 %s26, %s47
      %s56 = sor.u32 %s54, %s55
      %p57 = scmp.eq.s32.totalorder %s56, 0
      %s59 = sadd.s32 %s58, 1
      %s60 = scalar_select %p57, %s58, %s59
      %p63 = pneg %p57
      %p64 = scmp.eq.s32.totalorder %s18, 7
      %p65 = por %p63, %p64
      %p66 = scmp.ne.s32.totalorder %s58, %s61
      %p67 = scmp.eq.s32.totalorder %s18, 0
      %p68 = por %p66, %p67
      %p69 = scmp.ne.s32.totalorder %s58, %s61
      %p70 = scmp.eq.s32.totalorder %s23, 7
      %p71 = por %p69, %p70
      %p72 = scmp.ne.s32.totalorder %s61, %s62
      %p73 = scmp.eq.s32.totalorder %s23, 0
      %p74 = por %p72, %p73
      %p75 = scmp.ne.s32.totalorder %s61, %s62
      %p76 = scmp.eq.s32.totalorder %s24, 7
      %p77 = por %p75, %p76
      %p79 = scmp.ne.s32.totalorder %s62, %s78
      %p80 = scmp.eq.s32.totalorder %s24, 0
      %p81 = por %p79, %p80
      %s82 = ssub.s32 %s25, %s51
      %s83 = ssub.s32 %s28, %s39
      %s84 = sor.u32 %s82, %s83
      %s85 = ssub.s32 %s26, %s47
      %s86 = sor.u32 %s84, %s85
      %p87 = scmp.eq.s32.totalorder %s86, 0
      %s89 = sadd.s32 %s88, 1
      %s90 = scalar_select %p87, %s88, %s89
      %p93 = pneg %p87
      %p94 = scmp.eq.s32.totalorder %s18, 7
      %p95 = por %p93, %p94
      %p96 = scmp.ne.s32.totalorder %s88, %s91
      %p97 = scmp.eq.s32.totalorder %s18, 0
      %p98 = por %p96, %p97
      %p99 = scmp.ne.s32.totalorder %s88, %s91
      %p100 = scmp.eq.s32.totalorder %s23, 7
      %p101 = por %p99, %p100
      %p102 = scmp.ne.s32.totalorder %s91, %s92
      %p103 = scmp.eq.s32.totalorder %s23, 0
      %p104 = por %p102, %p103
      %p105 = scmp.ne.s32.totalorder %s91, %s92
      %p106 = scmp.eq.s32.totalorder %s24, 7
      %p107 = por %p105, %p106
      %p109 = scmp.ne.s32.totalorder %s92, %s108
      %p110 = scmp.eq.s32.totalorder %s24, 0
      %p111 = por %p109, %p110
      %s112 = ssub.s32 %s25, %s51
      %s113 = ssub.s32 %s28, %s39
      %s114 = sor.u32 %s112, %s113
      %s115 = ssub.s32 %s26, %s47
      %s116 = sor.u32 %s114, %s115
      %p117 = scmp.eq.s32.totalorder %s116, 0
      %s119 = sadd.s32 %s118, 1
      %s120 = scalar_select %p117, %s118, %s119
      %p123 = pneg %p117
      %p124 = scmp.eq.s32.totalorder %s18, 7
      %p125 = por %p123, %p124
      %p126 = scmp.ne.s32.totalorder %s118, %s121
      %p127 = scmp.eq.s32.totalorder %s18, 0
      %p128 = por %p126, %p127
      %p129 = scmp.ne.s32.totalorder %s118, %s121
      %p130 = scmp.eq.s32.totalorder %s23, 7
      %p131 = por %p129, %p130
      %p132 = scmp.ne.s32.totalorder %s121, %s122
      %p133 = scmp.eq.s32.totalorder %s23, 0
      %p134 = por %p132, %p133
      %p135 = scmp.ne.s32.totalorder %s121, %s122
      %p136 = scmp.eq.s32.totalorder %s24, 7
      %p137 = por %p135, %p136
      %p139 = scmp.ne.s32.totalorder %s122, %s138
      %p140 = scmp.eq.s32.totalorder %s24, 0
      %p141 = por %p139, %p140
      %s142 = ssub.s32 %s25, %s51
      %s143 = ssub.s32 %s27, %s43
      %s144 = sor.u32 %s142, %s143
      %s145 = ssub.s32 %s26, %s47
      %s146 = sor.u32 %s144, %s145
      %p147 = scmp.eq.s32.totalorder %s146, 0
      %s149 = sadd.s32 %s148, 1
      %s150 = scalar_select %p147, %s148, %s149
      %p153 = pneg %p147
      %p154 = scmp.eq.s32.totalorder %s18, 7
      %p155 = por %p153, %p154
      %p156 = scmp.ne.s32.totalorder %s148, %s151
      %p157 = scmp.eq.s32.totalorder %s18, 0
      %p158 = por %p156, %p157
      %p159 = scmp.ne.s32.totalorder %s148, %s151
      %p160 = scmp.eq.s32.totalorder %s23, 7
      %p161 = por %p159, %p160
      %p162 = scmp.ne.s32.totalorder %s151, %s152
      %p163 = scmp.eq.s32.totalorder %s23, 0
      %p164 = por %p162, %p163
      %p165 = scmp.ne.s32.totalorder %s151, %s152
      %p166 = scmp.eq.s32.totalorder %s24, 7
      %p167 = por %p165, %p166
      %p169 = scmp.ne.s32.totalorder %s152, %s168
      %p170 = scmp.eq.s32.totalorder %s24, 0
      %p171 = por %p169, %p170
      %p172 = scmp.le.s32.totalorder 1, %s18
      %p173 = scmp.lt.s32.totalorder %s18, 9
      %p174 = pnand %p172, %p173
      %p175 = pneg %p174
      // Predicated region
      $region9: #{tpu_custom_call.1} parent=5 // pred_check
        _
      $region10: #{tpu_custom_call.1} parent=5 // pred_check_branch
        %177 = sbr.rel (%p174) target = $region12
      $region11: #{tpu_custom_call.1} parent=5 // pred_region
        %s178 = ssub.s32 %s18, 1
      $region12: #{tpu_custom_call.1} parent=5 // pred_fallthru
        _
      %p179 = scmp.lt.s32.totalorder %s18, 8
      // Predicated region
      $region13: #{tpu_custom_call.1} parent=5 // pred_check
        %p180 = pneg %p179
      $region14: #{tpu_custom_call.1} parent=5 // pred_check_branch
        %182 = sbr.rel (%p180) target = $region16
      $region15: #{tpu_custom_call.1} parent=5 // pred_region
        // Predicated region
        $region17: #{tpu_custom_call.1} parent=15 // pred_check
          %p183 = pneg %p68
        $region18: #{tpu_custom_call.1} parent=15 // pred_check_branch
          %185 = sbr.rel (%p183) target = $region20
        $region19: #{tpu_custom_call.1} parent=15 // pred_region
          %s186 = sand.u32 %s58, 1
          %s187 = scalar_lea.sflag [#allocation6], %s186
          %s188 = sand.u32 %s58, 1
          %s189 = smul.addr %s188, 16
          %s190 = scalar_lea.vmem [#allocation5], %s189
          %s191 = smul.u32 16, %s27
          %193 = vsyncadd %s187, 0
          %s194 = smul.addr %s191, 4
          %s195 = sadd.s32 %s26, %s194
          %s196 = smul.addr %s25, 64
          %s197 = sadd.s32 %s195, %s196
          %s198 = scalar_lea.hbm %s0, %s197
          %s199 = sshll.u32 %s198, 4
          %s200 = int_to_ptr.hbm [resolvable:$true] %s199
          %s201 = sshll.u32 %s190, 4
          %s202 = int_to_ptr.vmem [resolvable:$true] %s201
          %207 = dma.hbm_to_vmem [thread:$0]  %s200, 256, %s202, %s187, 64, 16, 1
        $region20: #{tpu_custom_call.1} parent=15 // pred_fallthru
          _
        // Predicated region
        $region21: #{tpu_custom_call.1} parent=15 // pred_check
          %p208 = pneg %p98
        $region22: #{tpu_custom_call.1} parent=15 // pred_check_branch
          %210 = sbr.rel (%p208) target = $region24
        $region23: #{tpu_custom_call.1} parent=15 // pred_region
          %s211 = sand.u32 %s18, 1
          %s212 = scalar_lea.sflag [#allocation9], %s211
          %s213 = sand.u32 %s88, 1
          %s214 = smul.addr %s213, 16
          %s215 = scalar_lea.vmem [#allocation8], %s214
          %s216 = smul.u32 16, %s28
          %218 = vsyncadd %s212, 0
          %s219 = smul.addr %s216, 4
          %s220 = sadd.s32 %s26, %s219
          %s221 = smul.addr %s25, 64
          %s222 = sadd.s32 %s220, %s221
          %s223 = scalar_lea.hbm %s1, %s222
          %s224 = sshll.u32 %s223, 4
          %s225 = int_to_ptr.hbm [resolvable:$true] %s224
          %s226 = sshll.u32 %s215, 4
          %s227 = int_to_ptr.vmem [resolvable:$true] %s226
          %232 = dma.hbm_to_vmem [thread:$0]  %s225, 256, %s227, %s212, 64, 16, 1
        $region24: #{tpu_custom_call.1} parent=15 // pred_fallthru
          _
        // Predicated region
        $region25: #{tpu_custom_call.1} parent=15 // pred_check
          %p233 = pneg %p128
        $region26: #{tpu_custom_call.1} parent=15 // pred_check_branch
          %235 = sbr.rel (%p233) target = $region28
        $region27: #{tpu_custom_call.1} parent=15 // pred_region
          %s236 = sand.u32 %s18, 1
          %s237 = scalar_lea.sflag [#allocation9], %s236
          %s238 = sand.u32 %s118, 1
          %s239 = smul.addr %s238, 16
          %s240 = scalar_lea.vmem [#allocation10], %s239
          %s241 = smul.u32 16, %s28
          %243 = vsyncadd %s237, 0
          %s244 = smul.addr %s241, 4
          %s245 = sadd.s32 %s26, %s244
          %s246 = smul.addr %s25, 64
          %s247 = sadd.s32 %s245, %s246
          %s248 = scalar_lea.hbm %s2, %s247
          %s249 = sshll.u32 %s248, 4
          %s250 = int_to_ptr.hbm [resolvable:$true] %s249
          %s251 = sshll.u32 %s240, 4
          %s252 = int_to_ptr.vmem [resolvable:$true] %s251
          %257 = dma.hbm_to_vmem [thread:$0]  %s250, 256, %s252, %s237, 64, 16, 1
        $region28: #{tpu_custom_call.1} parent=15 // pred_fallthru
          _
      $region16: #{tpu_custom_call.1} parent=5 // pred_fallthru
        _
      %p258 = scmp.le.s32.totalorder 1, %s18
      %p259 = scmp.lt.s32.totalorder %s18, 9
      %p260 = pnand %p258, %p259
      %p261 = pneg %p260
      // Predicated region
      $region29: #{tpu_custom_call.1} parent=5 // pred_check
        _
      $region30: #{tpu_custom_call.1} parent=5 // pred_check_branch
        %263 = sbr.rel (%p260) target = $region32
      $region31: #{tpu_custom_call.1} parent=5 // pred_region
        %s264 = ssub.s32 %s18, 1
        %s265 = sand.u32 %s61, 1
        %s266 = scalar_lea.sflag [#allocation6], %s265
        %s267 = sand.u32 %s61, 1
        %s268 = smul.addr %s267, 16
        %s269 = scalar_lea.vmem [#allocation5], %s268
        // Predicated region
        $region33: #{tpu_custom_call.1} parent=31 // pred_check
          %p270 = pneg %p74
        $region34: #{tpu_custom_call.1} parent=31 // pred_check_branch
          %272 = sbr.rel (%p270) target = $region36
        $region35: #{tpu_custom_call.1} parent=31 // pred_region
          %274 = dma.done %s266, 256
        $region36: #{tpu_custom_call.1} parent=31 // pred_fallthru
          _
        %s275 = sand.u32 %s23, 1
        %s276 = scalar_lea.sflag [#allocation9], %s275
        %s277 = sand.u32 %s91, 1
        %s278 = smul.addr %s277, 16
        %s279 = scalar_lea.vmem [#allocation8], %s278
        // Predicated region
        $region37: #{tpu_custom_call.1} parent=31 // pred_check
          %p280 = pneg %p104
        $region38: #{tpu_custom_call.1} parent=31 // pred_check_branch
          %282 = sbr.rel (%p280) target = $region40
        $region39: #{tpu_custom_call.1} parent=31 // pred_region
          %284 = dma.done %s276, 256
        $region40: #{tpu_custom_call.1} parent=31 // pred_fallthru
          _
        %s285 = sand.u32 %s23, 1
        %s286 = scalar_lea.sflag [#allocation9], %s285
        %s287 = sand.u32 %s121, 1
        %s288 = smul.addr %s287, 16
        %s289 = scalar_lea.vmem [#allocation10], %s288
        // Predicated region
        $region41: #{tpu_custom_call.1} parent=31 // pred_check
          %p290 = pneg %p134
        $region42: #{tpu_custom_call.1} parent=31 // pred_check_branch
          %292 = sbr.rel (%p290) target = $region44
        $region43: #{tpu_custom_call.1} parent=31 // pred_region
          %294 = dma.done %s286, 256
        $region44: #{tpu_custom_call.1} parent=31 // pred_fallthru
          _
        %s295 = sand.u32 %s61, 1
        %s296 = scalar_lea.sflag [#allocation6], %s295
        %s297 = sand.u32 %s61, 1
        %s298 = smul.addr %s297, 16
        %s299 = scalar_lea.vmem [#allocation5], %s298
        %p300 = pneg %p74
        %p301 = pneg %p71
        %s302 = sand.u32 %s23, 1
        %s303 = scalar_lea.sflag [#allocation9], %s302
        %s304 = sand.u32 %s91, 1
        %s305 = smul.addr %s304, 16
        %s306 = scalar_lea.vmem [#allocation8], %s305
        %p307 = pneg %p104
        %p308 = pneg %p101
        %s309 = sand.u32 %s23, 1
        %s310 = scalar_lea.sflag [#allocation9], %s309
        %s311 = sand.u32 %s121, 1
        %s312 = smul.addr %s311, 16
        %s313 = scalar_lea.vmem [#allocation10], %s312
        %p314 = pneg %p134
        %p315 = pneg %p131
        %p316 = pneg %p164
        %p317 = pneg %p161
        %s318 = sand.u32 %s151, 1
        %s319 = scalar_lea.sflag [#allocation7], %s318
        %s320 = sand.u32 %s151, 1
        %s321 = smul.addr %s320, 16
        %s322 = scalar_lea.vmem [#allocation11], %s321
        %s323 = smul.u32 16, %s31
        %s324 = smul.u32 16, %s32
        %s325 = smul.u32 16, %s32
        %s326 = smul.u32 16, %s31
        %p327 = scmp.eq.s32.totalorder %s32, 0
        // Predicated region
        $region45: #{tpu_custom_call.1} parent=31 // pred_check
          %p328 = pneg %p327
        $region46: #{tpu_custom_call.1} parent=31 // pred_check_branch
          %330 = sbr.rel (%p328) target = $region48
        $region47: #{tpu_custom_call.1} parent=31 // pred_region
          %vm331 = vcmask 7168
          %332 = vst.msk [vmem:[#allocation2] sm:$0xff] %vm331, -1e+30
          %333 = vst.msk [vmem:[#allocation2 + $0x8] sm:$0xff] %vm331, -1e+30
          %334 = vst.msk [vmem:[#allocation3] sm:$0xff] %vm331, 0.0
          %335 = vst.msk [vmem:[#allocation3 + $0x8] sm:$0xff] %vm331, 0.0
          %vm336 = vcmask 523264
          %337 = vst.msk [vmem:[#allocation4] sm:$0xff] %vm336, 0.0
          %338 = vst.msk [vmem:[#allocation4 + $0x8] sm:$0xff] %vm336, 0.0
        $region48: #{tpu_custom_call.1} parent=31 // pred_fallthru
          _
        %s339 = smul.u32 %s31, 16
        %s340 = smul.u32 %s32, 16
        %s341 = sadd.s32 %s339, 16
        %p342 = scmp.lt.s32.totalorder %s340, %s341
        // Predicated region
        $region49: #{tpu_custom_call.1} parent=31 // pred_check
          %p343 = pneg %p342
        $region50: #{tpu_custom_call.1} parent=31 // pred_check_branch
          %345 = sbr.rel (%p343) target = $region52
        $region51: #{tpu_custom_call.1} parent=31 // pred_region
          %v346 = vld [vmem:[%s269] sm:$0x1]
          %v347 = vld [vmem:[%s269 + $0x1] sm:$0x1]
          %v348 = vld [vmem:[%s269 + $0x2] sm:$0x1]
          %v349 = vld [vmem:[%s269 + $0x3] sm:$0x1]
          %v350 = vld [vmem:[%s269 + $0x4] sm:$0x1]
          %v351 = vld [vmem:[%s269 + $0x5] sm:$0x1]
          %v352 = vld [vmem:[%s269 + $0x6] sm:$0x1]
          %v353 = vld [vmem:[%s269 + $0x7] sm:$0x1]
          %v354 = vld [vmem:[%s269 + $0x8] sm:$0x1]
          %v355 = vld [vmem:[%s269 + $0x9] sm:$0x1]
          %v356 = vld [vmem:[%s269 + $0xa] sm:$0x1]
          %v357 = vld [vmem:[%s269 + $0xb] sm:$0x1]
          %v358 = vld [vmem:[%s269 + $0xc] sm:$0x1]
          %v359 = vld [vmem:[%s269 + $0xd] sm:$0x1]
          %v360 = vld [vmem:[%s269 + $0xe] sm:$0x1]
          %v361 = vld [vmem:[%s269 + $0xf] sm:$0x1]
          %v362 = vld [vmem:[%s279] sm:$0x1]
          %v363 = vld [vmem:[%s279 + $0x1] sm:$0x1]
          %v364 = vld [vmem:[%s279 + $0x2] sm:$0x1]
          %v365 = vld [vmem:[%s279 + $0x3] sm:$0x1]
          %v366 = vld [vmem:[%s279 + $0x4] sm:$0x1]
          %v367 = vld [vmem:[%s279 + $0x5] sm:$0x1]
          %v368 = vld [vmem:[%s279 + $0x6] sm:$0x1]
          %v369 = vld [vmem:[%s279 + $0x7] sm:$0x1]
          %v370 = vld [vmem:[%s279 + $0x8] sm:$0x1]
          %v371 = vld [vmem:[%s279 + $0x9] sm:$0x1]
          %v372 = vld [vmem:[%s279 + $0xa] sm:$0x1]
          %v373 = vld [vmem:[%s279 + $0xb] sm:$0x1]
          %v374 = vld [vmem:[%s279 + $0xc] sm:$0x1]
          %v375 = vld [vmem:[%s279 + $0xd] sm:$0x1]
          %v376 = vld [vmem:[%s279 + $0xe] sm:$0x1]
          %v377 = vld [vmem:[%s279 + $0xf] sm:$0x1]
          %v378 = vld [vmem:[%s289] sm:$0x1]
          %v379 = vld [vmem:[%s289 + $0x1] sm:$0x1]
          %v380 = vld [vmem:[%s289 + $0x2] sm:$0x1]
          %v381 = vld [vmem:[%s289 + $0x3] sm:$0x1]
          %v382 = vld [vmem:[%s289 + $0x4] sm:$0x1]
          %v383 = vld [vmem:[%s289 + $0x5] sm:$0x1]
          %v384 = vld [vmem:[%s289 + $0x6] sm:$0x1]
          %v385 = vld [vmem:[%s289 + $0x7] sm:$0x1]
          %v386 = vld [vmem:[%s289 + $0x8] sm:$0x1]
          %v387 = vld [vmem:[%s289 + $0x9] sm:$0x1]
          %v388 = vld [vmem:[%s289 + $0xa] sm:$0x1]
          %v389 = vld [vmem:[%s289 + $0xb] sm:$0x1]
          %v390 = vld [vmem:[%s289 + $0xc] sm:$0x1]
          %v391 = vld [vmem:[%s289 + $0xd] sm:$0x1]
          %v392 = vld [vmem:[%s289 + $0xe] sm:$0x1]
          %v393 = vld [vmem:[%s289 + $0xf] sm:$0x1]
          %v394 = vmul.f32 %v346, 0.125
          %v395 = vmul.f32 %v347, 0.125
          %v396 = vmul.f32 %v348, 0.125
          %v397 = vmul.f32 %v349, 0.125
          %v398 = vmul.f32 %v350, 0.125
          %v399 = vmul.f32 %v351, 0.125
          %v400 = vmul.f32 %v352, 0.125
          %v401 = vmul.f32 %v353, 0.125
          %v402 = vmul.f32 %v354, 0.125
          %v403 = vmul.f32 %v355, 0.125
          %v404 = vmul.f32 %v356, 0.125
          %v405 = vmul.f32 %v357, 0.125
          %v406 = vmul.f32 %v358, 0.125
          %v407 = vmul.f32 %v359, 0.125
          %v408 = vmul.f32 %v360, 0.125
          %v409 = vmul.f32 %v361, 0.125
          %426 = vst [vmem:[#allocation1] ss:$9 sm:$0xff] %v394
          %s427 = scalar_lea.vmem [#allocation1], 1
          %428 = vst [vmem:[%s427] ss:$9 sm:$0xff] %v395
          %s429 = scalar_lea.vmem [#allocation1], 2
          %430 = vst [vmem:[%s429] ss:$9 sm:$0xff] %v396
          %s431 = scalar_lea.vmem [#allocation1], 3
          %432 = vst [vmem:[%s431] ss:$9 sm:$0xff] %v397
          %s433 = scalar_lea.vmem [#allocation1], 4
          %434 = vst [vmem:[%s433] ss:$9 sm:$0xff] %v398
          %s435 = scalar_lea.vmem [#allocation1], 5
          %436 = vst [vmem:[%s435] ss:$9 sm:$0xff] %v399
          %s437 = scalar_lea.vmem [#allocation1], 6
          %438 = vst [vmem:[%s437] ss:$9 sm:$0xff] %v400
          %s439 = scalar_lea.vmem [#allocation1], 7
          %440 = vst [vmem:[%s439] ss:$9 sm:$0xff] %v401
          %v441 = vld [vmem:[#allocation1] sm:$0xff]
          %442 = vst [vmem:[#allocation1] ss:$9 sm:$0xff] %v402
          %443 = vst [vmem:[%s427] ss:$9 sm:$0xff] %v403
          %444 = vst [vmem:[%s429] ss:$9 sm:$0xff] %v404
          %445 = vst [vmem:[%s431] ss:$9 sm:$0xff] %v405
          %446 = vst [vmem:[%s433] ss:$9 sm:$0xff] %v406
          %447 = vst [vmem:[%s435] ss:$9 sm:$0xff] %v407
          %448 = vst [vmem:[%s437] ss:$9 sm:$0xff] %v408
          %449 = vst [vmem:[%s439] ss:$9 sm:$0xff] %v409
          %v450 = vld [vmem:[#allocation1] sm:$0xff]
          %467 = vst [vmem:[#allocation1] ss:$9 sm:$0xff] %v362
          %s468 = scalar_lea.vmem [#allocation1], 1
          %469 = vst [vmem:[%s468] ss:$9 sm:$0xff] %v363
          %s470 = scalar_lea.vmem [#allocation1], 2
          %471 = vst [vmem:[%s470] ss:$9 sm:$0xff] %v364
          %s472 = scalar_lea.vmem [#allocation1], 3
          %473 = vst [vmem:[%s472] ss:$9 sm:$0xff] %v365
          %s474 = scalar_lea.vmem [#allocation1], 4
          %475 = vst [vmem:[%s474] ss:$9 sm:$0xff] %v366
          %s476 = scalar_lea.vmem [#allocation1], 5
          %477 = vst [vmem:[%s476] ss:$9 sm:$0xff] %v367
          %s478 = scalar_lea.vmem [#allocation1], 6
          %479 = vst [vmem:[%s478] ss:$9 sm:$0xff] %v368
          %s480 = scalar_lea.vmem [#allocation1], 7
          %481 = vst [vmem:[%s480] ss:$9 sm:$0xff] %v369
          %v482 = vld [vmem:[#allocation1] sm:$0xff]
          %483 = vst [vmem:[#allocation1] ss:$9 sm:$0xff] %v370
          %484 = vst [vmem:[%s468] ss:$9 sm:$0xff] %v371
          %485 = vst [vmem:[%s470] ss:$9 sm:$0xff] %v372
          %486 = vst [vmem:[%s472] ss:$9 sm:$0xff] %v373
          %487 = vst [vmem:[%s474] ss:$9 sm:$0xff] %v374
          %488 = vst [vmem:[%s476] ss:$9 sm:$0xff] %v375
          %489 = vst [vmem:[%s478] ss:$9 sm:$0xff] %v376
          %490 = vst [vmem:[%s480] ss:$9 sm:$0xff] %v377
          %v491 = vld [vmem:[#allocation1] sm:$0xff]
          %vm492 = vcmask 523264
          %v493 = vsel %vm492, %v441, 0
          %v495 = vsel %vm492, %v450, 0
          %v497 = vsel %vm492, %v482, 0
          %v499 = vsel %vm492, %v491, 0
          %501 = vmatpush.xpose.msra.mxu0 0.0
          %502 = vmatpush.xpose.msra.mxu0 0.0
          %503 = vmatpush.xpose.msra.mxu0 0.0
          %504 = vmatpush.xpose.msra.mxu0 0.0
          %505 = vmatpush.xpose.msra.mxu0 0.0
          %506 = vmatpush.xpose.msra.mxu0 0.0
          %507 = vmatpush.xpose.msra.mxu0 0.0
          %508 = vmatpush.xpose.msra.mxu0 0.0
          %509 = vmatpush.xpose.msra.mxu0 0.0
          %510 = vmatpush.xpose.msra.mxu0 0.0
          %511 = vmatpush.xpose.msra.mxu0 0.0
          %512 = vmatpush.xpose.msra.mxu0 0.0
          %513 = vmatpush.xpose.msra.mxu0 0.0
          %514 = vmatpush.xpose.msra.mxu0 0.0
          %515 = vmatpush.xpose.msra.mxu0 %v499
          %516 = vmatpush.xpose.msra.mxu0 %v497
          %517 = vmatmul.f32.gmra.mxu0 %v493
          %v518 = vpop.f32.mrf.mxu0
          %v519 = vadd.f32 0.0, %v518
          %520 = vmatmul.f32.gmra.mxu0 %v495
          %v521 = vpop.f32.mrf.mxu0
          %v522 = vadd.f32 0.0, %v521
          %523 = vdwg.mxu0
          %v524 = vstv %s339
          %v525 = vadd.s32 %v524, 1
          %v526 = vadd.s32 %v524, 2
          %v527 = vadd.s32 %v524, 3
          %v528 = vadd.s32 %v524, 4
          %v529 = vadd.s32 %v524, 5
          %v530 = vadd.s32 %v524, 6
          %v531 = vadd.s32 %v524, 7
          %v532 = vadd.s32 %v524, 8
          %v533 = vadd.s32 %v524, 9
          %v534 = vadd.s32 %v524, 10
          %v535 = vadd.s32 %v524, 11
          %v536 = vadd.s32 %v524, 12
          %v537 = vadd.s32 %v524, 13
          %v538 = vadd.s32 %v524, 14
          %v539 = vadd.s32 %v524, 15
          %v540 = vlaneseq
          %v541 = vand.u32 %v540, 127
          %v542 = vstv %s340
          %v543 = vadd.s32 %v542, %v541
          %vm544 = vcmask 1041409
          %v545 = vsel %vm544, %v525, %v524
          %vm546 = vcmask 1042434
          %v547 = vsel %vm546, %v526, %v545
          %vm548 = vcmask 1043459
          %v549 = vsel %vm548, %v527, %v547
          %vm550 = vcmask 1044484
          %v551 = vsel %vm550, %v528, %v549
          %vm552 = vcmask 1045509
          %v553 = vsel %vm552, %v529, %v551
          %vm554 = vcmask 1046534
          %v555 = vsel %vm554, %v530, %v553
          %vm556 = vcmask 1047559
          %v557 = vsel %vm556, %v531, %v555
          %v558 = vsel %vm544, %v533, %v532
          %v559 = vsel %vm546, %v534, %v558
          %v560 = vsel %vm548, %v535, %v559
          %v561 = vsel %vm550, %v536, %v560
          %v562 = vsel %vm552, %v537, %v561
          %v563 = vsel %vm554, %v538, %v562
          %v564 = vsel %vm556, %v539, %v563
          %vm565 = vcmp.le.s32.totalorder %v543, %v557
          %vm566 = vcmp.le.s32.totalorder %v543, %v564
          %vm567 = vcmp.lt.s32.totalorder %v543, 16
          %v568 = vsel %vm567, 1, 0
          %vm569 = vcmp.eq.s32.totalorder %v568, 1
          %vm570 = vmand %vm565, %vm569
          %vm571 = vmand %vm566, %vm569
          %v572 = vsel %vm570, %v519, -1e+30
          %v573 = vsel %vm571, %v522, -1e+30
          %v574 = vld [vmem:[#allocation2] sm:$0xff]
          %v575 = vld [vmem:[#allocation2 + $0x8] sm:$0xff]
          %vm576 = vcmask 130048
          %v577 = vsel %vm576, %v572, -inf
          %578 = vmax.xlane.f32.xlu0 %v577
          %v579 = vpop.xlane.xlu0 %578
          %v580 = vsel %vm576, %v573, -inf
          %581 = vmax.xlane.f32.xlu0 %v580
          %v582 = vpop.xlane.xlu0 %581
          %v583 = vmax.f32 %v574, %v579
          %v584 = vmax.f32 %v575, %v582
          %v585 = vsub.f32 %v574, %v583
          %v586 = vsub.f32 %v575, %v584
          %v587 = vmul.f32 %v585, 1.442695
          %v588 = vpow.pop %v587
          %v589 = vmul.f32 %v586, 1.442695
          %v590 = vpow.pop %v589
          %592 = vset.pattern.permute.xlu0 0
          %593 = vperm.xlu0 %592, %v583
          %v594 = vpop.permute.xlu0 %593
          %597 = vset.pattern.permute.xlu0 0
          %598 = vperm.xlu0 %597, %v584
          %v599 = vpop.permute.xlu0 %598
          %v601 = vsub.f32 %v572, %v594
          %v602 = vsub.f32 %v573, %v599
          %v603 = vmul.f32 %v601, 1.442695
          %v604 = vpow.pop %v603
          %v605 = vmul.f32 %v602, 1.442695
          %v606 = vpow.pop %v605
          %v607 = vsel %vm570, %v604, 0.0
          %v608 = vsel %vm571, %v606, 0.0
          %v609 = vld [vmem:[#allocation3] sm:$0xff]
          %v610 = vld [vmem:[#allocation3 + $0x8] sm:$0xff]
          %v611 = vmul.f32 %v588, %v609
          %v612 = vmul.f32 %v590, %v610
          %v613 = vsel %vm576, %v607, 0.0
          %614 = vadd.xlane.f32.xlu0 %v613
          %v615 = vpop.xlane.xlu0 %614
          %v616 = vsel %vm576, %v608, 0.0
          %617 = vadd.xlane.f32.xlu0 %v616
          %v618 = vpop.xlane.xlu0 %617
          %v619 = vadd.f32 %v611, %v615
          %v620 = vadd.f32 %v612, %v618
          %vm621 = vcmask 7168
          %622 = vst.msk [vmem:[#allocation3] sm:$0xff] %vm621, %v619
          %623 = vst.msk [vmem:[#allocation3 + $0x8] sm:$0xff] %vm621, %v620
          %v624 = vld [vmem:[#allocation4] sm:$0xff]
          %v625 = vld [vmem:[#allocation4 + $0x8] sm:$0xff]
          %627 = vset.pattern.permute.xlu0 0
          %628 = vperm.xlu0 %627, %v588
          %v629 = vpop.permute.xlu0 %628
          %632 = vset.pattern.permute.xlu0 0
          %633 = vperm.xlu0 %632, %v590
          %v634 = vpop.permute.xlu0 %633
          %v636 = vmul.f32 %v629, %v624
          %v637 = vmul.f32 %v634, %v625
          %654 = vst [vmem:[#allocation1] ss:$9 sm:$0xff] %v378
          %s655 = scalar_lea.vmem [#allocation1], 1
          %656 = vst [vmem:[%s655] ss:$9 sm:$0xff] %v379
          %s657 = scalar_lea.vmem [#allocation1], 2
          %658 = vst [vmem:[%s657] ss:$9 sm:$0xff] %v380
          %s659 = scalar_lea.vmem [#allocation1], 3
          %660 = vst [vmem:[%s659] ss:$9 sm:$0xff] %v381
          %s661 = scalar_lea.vmem [#allocation1], 4
          %662 = vst [vmem:[%s661] ss:$9 sm:$0xff] %v382
          %s663 = scalar_lea.vmem [#allocation1], 5
          %664 = vst [vmem:[%s663] ss:$9 sm:$0xff] %v383
          %s665 = scalar_lea.vmem [#allocation1], 6
          %666 = vst [vmem:[%s665] ss:$9 sm:$0xff] %v384
          %s667 = scalar_lea.vmem [#allocation1], 7
          %668 = vst [vmem:[%s667] ss:$9 sm:$0xff] %v385
          %v669 = vld [vmem:[#allocation1] sm:$0xff]
          %670 = vst [vmem:[#allocation1] ss:$9 sm:$0xff] %v386
          %671 = vst [vmem:[%s655] ss:$9 sm:$0xff] %v387
          %672 = vst [vmem:[%s657] ss:$9 sm:$0xff] %v388
          %673 = vst [vmem:[%s659] ss:$9 sm:$0xff] %v389
          %674 = vst [vmem:[%s661] ss:$9 sm:$0xff] %v390
          %675 = vst [vmem:[%s663] ss:$9 sm:$0xff] %v391
          %676 = vst [vmem:[%s665] ss:$9 sm:$0xff] %v392
          %677 = vst [vmem:[%s667] ss:$9 sm:$0xff] %v393
          %v678 = vld [vmem:[#allocation1] sm:$0xff]
          %v682 = vsel %vm576, %v607, 0
          %v685 = vsel %vm576, %v608, 0
          %687 = vmatpush.msra.mxu0 0.0
          %688 = vmatpush.msra.mxu0 0.0
          %689 = vmatpush.msra.mxu0 0.0
          %690 = vmatpush.msra.mxu0 0.0
          %691 = vmatpush.msra.mxu0 0.0
          %692 = vmatpush.msra.mxu0 0.0
          %693 = vmatpush.msra.mxu0 0.0
          %694 = vmatpush.msra.mxu0 0.0
          %695 = vmatpush.msra.mxu0 0.0
          %696 = vmatpush.msra.mxu0 0.0
          %697 = vmatpush.msra.mxu0 0.0
          %698 = vmatpush.msra.mxu0 0.0
          %699 = vmatpush.msra.mxu0 0.0
          %700 = vmatpush.msra.mxu0 0.0
          %701 = vmatpush.msra.mxu0 %v678
          %702 = vmatpush.msra.mxu0 %v669
          %703 = vmatmul.f32.gmra.mxu0 %v682
          %v704 = vpop.f32.mrf.mxu0
          %v705 = vadd.f32 0.0, %v704
          %706 = vmatmul.f32.gmra.mxu0 %v685
          %v707 = vpop.f32.mrf.mxu0
          %v708 = vadd.f32 0.0, %v707
          %709 = vdwg.mxu0
          %v710 = vadd.f32 %v636, %v705
          %v711 = vadd.f32 %v637, %v708
          %712 = vst.msk [vmem:[#allocation4] sm:$0xff] %vm492, %v710
          %713 = vst.msk [vmem:[#allocation4 + $0x8] sm:$0xff] %vm492, %v711
          %714 = vst.msk [vmem:[#allocation2] sm:$0xff] %vm621, %v583
          %715 = vst.msk [vmem:[#allocation2 + $0x8] sm:$0xff] %vm621, %v584
        $region52: #{tpu_custom_call.1} parent=31 // pred_fallthru
          _
        // Predicated region
        $region53: #{tpu_custom_call.1} parent=31 // pred_check
          %p716 = pneg %p327
        $region54: #{tpu_custom_call.1} parent=31 // pred_check_branch
          %718 = sbr.rel (%p716) target = $region56
        $region55: #{tpu_custom_call.1} parent=31 // pred_region
          %v719 = vld [vmem:[#allocation3] sm:$0xff]
          %v720 = vld [vmem:[#allocation3 + $0x8] sm:$0xff]
          %v721 = vmax.f32 %v719, 1e-30
          %v722 = vmax.f32 %v720, 1e-30
          %v723 = vld [vmem:[#allocation4] sm:$0xff]
          %v724 = vld [vmem:[#allocation4 + $0x8] sm:$0xff]
          %726 = vset.pattern.permute.xlu0 0
          %727 = vperm.xlu0 %726, %v721
          %v728 = vpop.permute.xlu0 %727
          %731 = vset.pattern.permute.xlu0 0
          %732 = vperm.xlu0 %731, %v722
          %v733 = vpop.permute.xlu0 %732
          %v735 = vrcp.pop %v728
          %v736 = vmul.f32 %v728, %v735
          %v737 = vsub.f32 1.0, %v736
          %v738 = vmul.f32 %v735, %v737
          %v739 = vadd.f32 %v735, %v738
          %vm740 = vweird.f32 %v728
          %vm741 = vweird.f32 %v735
          %vm742 = vmor %vm740, %vm741
          %v743 = vsel %vm742, %v735, %v739
          %v744 = vand.u32 2147483647, %v728
          %vm745 = vcmp.eq.f32.partialorder %v744, 8.507059e+37
          %v746 = vand.u32 %v728, 2147483648
          %v747 = vor.u32 1.1754944e-38, %v746
          %v748 = vsel %vm745, %v747, %v743
          %v749 = vmul.f32 %v723, %v748
          %v750 = vrcp.pop %v733
          %v751 = vmul.f32 %v733, %v750
          %v752 = vsub.f32 1.0, %v751
          %v753 = vmul.f32 %v750, %v752
          %v754 = vadd.f32 %v750, %v753
          %vm755 = vweird.f32 %v733
          %vm756 = vweird.f32 %v750
          %vm757 = vmor %vm755, %vm756
          %v758 = vsel %vm757, %v750, %v754
          %v759 = vand.u32 2147483647, %v733
          %vm760 = vcmp.eq.f32.partialorder %v759, 8.507059e+37
          %v761 = vand.u32 %v733, 2147483648
          %v762 = vor.u32 1.1754944e-38, %v761
          %v763 = vsel %vm760, %v762, %v758
          %v764 = vmul.f32 %v724, %v763
          %v767 = vrot.slane %v749, 1
          %v768 = vrot.slane %v749, 2
          %v769 = vrot.slane %v749, 3
          %v770 = vrot.slane %v749, 4
          %v771 = vrot.slane %v749, 5
          %v772 = vrot.slane %v749, 6
          %v773 = vrot.slane %v749, 7
          %v774 = vrot.slane %v764, 1
          %v775 = vrot.slane %v764, 2
          %v776 = vrot.slane %v764, 3
          %v777 = vrot.slane %v764, 4
          %v778 = vrot.slane %v764, 5
          %v779 = vrot.slane %v764, 6
          %v780 = vrot.slane %v764, 7
          %vm795 = vcmask 516096
          %796 = vst.msk [vmem:[%s322] sm:$0x1] %vm795, %v749
          %797 = vst.msk [vmem:[%s322 + $0x1] sm:$0x1] %vm795, %v767
          %798 = vst.msk [vmem:[%s322 + $0x2] sm:$0x1] %vm795, %v768
          %799 = vst.msk [vmem:[%s322 + $0x3] sm:$0x1] %vm795, %v769
          %800 = vst.msk [vmem:[%s322 + $0x4] sm:$0x1] %vm795, %v770
          %801 = vst.msk [vmem:[%s322 + $0x5] sm:$0x1] %vm795, %v771
          %802 = vst.msk [vmem:[%s322 + $0x6] sm:$0x1] %vm795, %v772
          %803 = vst.msk [vmem:[%s322 + $0x7] sm:$0x1] %vm795, %v773
          %804 = vst.msk [vmem:[%s322 + $0x8] sm:$0x1] %vm795, %v764
          %805 = vst.msk [vmem:[%s322 + $0x9] sm:$0x1] %vm795, %v774
          %806 = vst.msk [vmem:[%s322 + $0xa] sm:$0x1] %vm795, %v775
          %807 = vst.msk [vmem:[%s322 + $0xb] sm:$0x1] %vm795, %v776
          %808 = vst.msk [vmem:[%s322 + $0xc] sm:$0x1] %vm795, %v777
          %809 = vst.msk [vmem:[%s322 + $0xd] sm:$0x1] %vm795, %v778
          %810 = vst.msk [vmem:[%s322 + $0xe] sm:$0x1] %vm795, %v779
          %811 = vst.msk [vmem:[%s322 + $0xf] sm:$0x1] %vm795, %v780
        $region56: #{tpu_custom_call.1} parent=31 // pred_fallthru
          _
        %s812 = sand.u32 %s151, 1
        %s813 = scalar_lea.sflag [#allocation7], %s812
        %s814 = sand.u32 %s151, 1
        %s815 = smul.addr %s814, 16
        %s816 = scalar_lea.vmem [#allocation11], %s815
        // Predicated region
        $region57: #{tpu_custom_call.1} parent=31 // pred_check
          %p817 = pneg %p161
        $region58: #{tpu_custom_call.1} parent=31 // pred_check_branch
          %819 = sbr.rel (%p817) target = $region60
        $region59: #{tpu_custom_call.1} parent=31 // pred_region
          %s820 = smul.u32 16, %s31
          %822 = vsyncadd %s813, 0
          %s823 = smul.addr %s820, 4
          %s824 = sadd.s32 %s30, %s823
          %s825 = smul.addr %s29, 64
          %s826 = sadd.s32 %s824, %s825
          %s827 = scalar_lea.hbm %s3, %s826
          %s828 = sshll.u32 %s816, 4
          %s829 = int_to_ptr.vmem [resolvable:$true] %s828
          %s830 = sshll.u32 %s827, 4
          %s831 = int_to_ptr.hbm [resolvable:$true] %s830
          %836 = dma.vmem_to_hbm [thread:$0]  %s829, 256, %s831, %s813, 16, 64, 1
        $region60: #{tpu_custom_call.1} parent=31 // pred_fallthru
          _
      $region32: #{tpu_custom_call.1} parent=5 // pred_fallthru
        _
      %p837 = scmp.le.s32.totalorder 2, %s18
      // Predicated region
      $region61: #{tpu_custom_call.1} parent=5 // pred_check
        %p838 = pneg %p837
      $region62: #{tpu_custom_call.1} parent=5 // pred_check_branch
        %840 = sbr.rel (%p838) target = $region64
      $region63: #{tpu_custom_call.1} parent=5 // pred_region
        %s841 = ssub.s32 %s18, 2
        // Predicated region
        $region65: #{tpu_custom_call.1} parent=63 // pred_check
          %p842 = pneg %p167
        $region66: #{tpu_custom_call.1} parent=63 // pred_check_branch
          %844 = sbr.rel (%p842) target = $region68
        $region67: #{tpu_custom_call.1} parent=63 // pred_region
          %s845 = sand.u32 %s152, 1
          %s846 = scalar_lea.sflag [#allocation7], %s845
          %s847 = sand.u32 %s152, 1
          %s848 = smul.addr %s847, 16
          %s849 = scalar_lea.vmem [#allocation11], %s848
          %851 = dma.done %s846, 256
        $region68: #{tpu_custom_call.1} parent=63 // pred_fallthru
          _
      $region64: #{tpu_custom_call.1} parent=5 // pred_fallthru
        _
    $region6: #{tpu_custom_call.1} parent=1 // loop_footer
      %s22 = sadd.s32 1, %s18
    $region7: #{tpu_custom_call.1} parent=1 // loop_footer_branch
      %17 = sbr.rel target = $region3
    $region8: #{tpu_custom_call.1} parent=1 // loop_exit
      _
    %852 = vsyncpa [#allocation6], 1
    %s853 = scalar_lea.sflag [#allocation6], 1
    %854 = vsyncpa %s853, 1
    %855 = vsyncpa [#allocation9], 1
    %s856 = scalar_lea.sflag [#allocation9], 1
    %857 = vsyncpa %s856, 1
    %858 = vsyncpa [#allocation7], 1
    %s859 = scalar_lea.sflag [#allocation7], 1
    %860 = vsyncpa %s859, 1

</llo_original>
